<compile_context>
chip_gen: v7x
topology: tpu7x:2x2x1
jax: 0.10.0
libtpu: 0.0.40
codegen_flags: <defaults>
</compile_context>

<pallas_src>
import jax
import jax.numpy as jnp
from jax import lax
from jax.experimental import pallas as pl
from jax.experimental.pallas import tpu as pltpu


def _round_up(x: int, m: int) -> int:
    return ((x + m - 1) // m) * m


# Safe everywhere: v5e/v6e have 128 MiB physical VMEM, v7x has 64 MiB per TC.
_VMEM_BUDGET = 40 * 1024 * 1024


def _pick_tiles(B: int, C: int, N: int, itemsize: int):
    """Largest (TB, TN) whose double-buffered footprint fits the VMEM budget."""
    c_pad = _round_up(C, 8)  # (C, TN) trailing tile pads C up to 8 sublanes
    tb = min(64, _round_up(B, 8))
    tn = min(4096, _round_up(N, 128))

    def vmem_bytes(tb_, tn_):
        in_bufs = 2 * 2 * tb_ * c_pad * tn_ * itemsize   # 2 inputs x 2 buffers
        out_bufs = 2 * tb_ * tn_ * 4                      # f32 accumulator x 2
        return in_bufs + out_bufs

    while vmem_bytes(tb, tn) > _VMEM_BUDGET and tn > 128:
        tn = max(128, (tn // 2) // 128 * 128)
    while vmem_bytes(tb, tn) > _VMEM_BUDGET and tb > 8:
        tb = max(8, (tb // 2) // 8 * 8)
    return tb, tn, vmem_bytes(tb, tn)


def ploss(pc1: jax.Array, pc2: jax.Array) -> jax.Array:
    """PLoss scalar for pc1, pc2 of shape (B, C, N)."""
    assert pc1.shape == pc2.shape and pc1.ndim == 3
    B, C, N = pc1.shape

    # Stream at native dtype (common type of the two inputs); TPU has no f64.
    dtype = jnp.promote_types(pc1.dtype, pc2.dtype)
    if dtype == jnp.float64:
        dtype = jnp.dtype(jnp.float32)
    pc1 = pc1.astype(dtype)
    pc2 = pc2.astype(dtype)
    itemsize = jnp.dtype(dtype).itemsize

    TB, TN, vmem_est = _pick_tiles(B, C, N, itemsize)

    GB = pl.cdiv(B, TB)           # batch tiles ("parallel")
    GN = pl.cdiv(N, TN)           # lane tiles along N
    # If the batch axis collapses to one tile, split N so a second "parallel"
    # axis exists and both v7x TensorCores get their own accumulator slab.
    NO = 2 if (GB == 1 and GN >= 2 and GN % 2 == 0) else 1
    NI = GN // NO                 # innermost, "arbitrary" (reduction) axis

    need_b_mask = (B % TB) != 0
    need_n_mask = (N % TN) != 0

    def kernel(pc1_ref, pc2_ref, out_ref):
        bi = pl.program_id(0)
        no = pl.program_id(1)
        ni = pl.program_id(2)

        # Zero the resident per-(bi, no) accumulator on the first inner step.
        @pl.when(ni == 0)
        def _():
            out_ref[...] = jnp.zeros_like(out_ref)

        # Full-block difference (upcast to f32 in VMEM), square, and reduce the
        # coordinate axis with a single sublane (XLU) reduce -> (TB, TN).
        d = pc1_ref[...].astype(jnp.float32) - pc2_ref[...].astype(jnp.float32)
        sq = jnp.sum(d * d, axis=1)

        if need_b_mask or need_n_mask:
            conds = []
            if need_b_mask:
                conds.append(bi == GB - 1)
            if need_n_mask:
                conds.append((no == NO - 1) & (ni == NI - 1))
            is_tail = conds[0] if len(conds) == 1 else jnp.logical_or(*conds)

            @pl.when(is_tail)
            def _():
                # Zero out-of-bounds rows/lanes BEFORE sqrt so padded garbage
                # cannot turn into NaN/inf contributions.
                row = lax.broadcasted_iota(jnp.int32, (TB, TN), 0) + bi * TB
                col = (lax.broadcasted_iota(jnp.int32, (TB, TN), 1)
                       + (no * NI + ni) * TN)
                valid = (row < B) & (col < N)
                out_ref[...] += jnp.sqrt(jnp.where(valid, sq, 0.0))

            @pl.when(jnp.logical_not(is_tail))
            def _():
                out_ref[...] += jnp.sqrt(sq)
        else:
            out_ref[...] += jnp.sqrt(sq)

    # Advisory (dtype-aware) cost hint for XLA scheduling around the call.
    cost = pl.CostEstimate(
        flops=3 * C * B * N + B * N,
        transcendentals=B * N,
        bytes_accessed=2 * B * C * N * itemsize + B * NO * TN * 4,
    )

    partial = pl.pallas_call(
        kernel,
        out_shape=jax.ShapeDtypeStruct((B, NO * TN), jnp.float32),
        grid_spec=pltpu.PrefetchScalarGridSpec(
            num_scalar_prefetch=0,
            grid=(GB, NO, NI),
            in_specs=[
                pl.BlockSpec((TB, C, TN), lambda bi, no, ni: (bi, 0, no * NI + ni)),
                pl.BlockSpec((TB, C, TN), lambda bi, no, ni: (bi, 0, no * NI + ni)),
            ],
            out_specs=pl.BlockSpec((TB, TN), lambda bi, no, ni: (bi, no)),
        ),
        compiler_params=pltpu.CompilerParams(
            dimension_semantics=("parallel", "parallel", "arbitrary"),
            vmem_limit_bytes=int(max(vmem_est + (4 << 20), 32 << 20)),
        ),
        cost_estimate=cost,
    )(pc1, pc2)

    # All clouds have the same number of points, so mean-of-means == global
    # mean: one division by the true B*N keeps f32 accumulation unbiased.
    # (Padded lanes of `partial` are exactly zero by construction.)
    return jnp.sum(partial) / (B * N)


def ploss_ref(pc1, pc2):
    d = jnp.sqrt(jnp.sum((pc1 - pc2) ** 2, axis=1))
    return jnp.mean(jnp.mean(d, axis=1))


if __name__ == "__main__":
    key = jax.random.PRNGKey(0)
    ks = jax.random.split(key, 8)

    # Case 1: aligned small shape (batch=2, 3-D points, 128 points per cloud).
    B, C, N = 2, 3, 128
    a1 = jax.random.normal(ks[0], (B, C, N), dtype=jnp.float32)
    b1 = jax.random.normal(ks[1], (B, C, N), dtype=jnp.float32)
    out1 = jax.block_until_ready(ploss(a1, b1))
    ref1 = jax.block_until_ready(ploss_ref(a1, b1))
    assert jnp.allclose(out1, ref1, rtol=1e-4, atol=1e-4), (out1, ref1)

    # Case 2: unaligned shape -> exercises the gated tail-mask path (B and N).
    B, C, N = 3, 3, 200
    a2 = jax.random.normal(ks[2], (B, C, N), dtype=jnp.float32)
    b2 = jax.random.normal(ks[3], (B, C, N), dtype=jnp.float32)
    out2 = jax.block_until_ready(ploss(a2, b2))
    ref2 = jax.block_until_ready(ploss_ref(a2, b2))
    assert jnp.allclose(out2, ref2, rtol=1e-4, atol=1e-4), (out2, ref2)

    # Case 3: long clouds -> exercises the split-parallel N axis (NO=2) plus
    # multi-step accumulation over the inner "arbitrary" axis (NI>1).
    B, C, N = 2, 3, 16384
    a3 = jax.random.normal(ks[4], (B, C, N), dtype=jnp.float32)
    b3 = jax.random.normal(ks[5], (B, C, N), dtype=jnp.float32)
    out3 = jax.block_until_ready(ploss(a3, b3))
    ref3 = jax.block_until_ready(ploss_ref(a3, b3))
    assert jnp.allclose(out3, ref3, rtol=1e-4, atol=1e-4), (out3, ref3)

    # Case 4: bf16 inputs -> native-dtype streaming with in-kernel upcast,
    # plus a tail tile inside the split-parallel grid.
    B, C, N = 2, 3, 8000
    a4 = jax.random.normal(ks[6], (B, C, N), dtype=jnp.float32).astype(jnp.bfloat16)
    b4 = jax.random.normal(ks[7], (B, C, N), dtype=jnp.float32).astype(jnp.bfloat16)
    out4 = jax.block_until_ready(ploss(a4, b4))
    ref4 = jax.block_until_ready(
        ploss_ref(a4.astype(jnp.float32), b4.astype(jnp.float32)))
    assert jnp.allclose(out4, ref4, rtol=1e-3, atol=1e-3), (out4, ref4)

    print("KERNEL_OK")
</pallas_src>

<mosaic_0001>
module attributes {stable_mosaic.version = 11 : i64} {
  func.func @kernel(%arg0: i32, %arg1: i32, %arg2: i32, %arg3: memref<8x3x128xf32, #tpu.memory_space<vmem>>, %arg4: memref<8x3x128xf32, #tpu.memory_space<vmem>>, %arg5: memref<8x128xf32, #tpu.memory_space<vmem>>) attributes {dimension_semantics = [#tpu.dimension_semantics<parallel>, #tpu.dimension_semantics<parallel>, #tpu.dimension_semantics<arbitrary>], iteration_bounds = array<i64: 1, 1, 1>, scalar_prefetch = 0 : i64, scratch_operands = 0 : i64, tpu.core_type = #tpu.core_type<tc>, window_params = [{transform_indices = @transform_0, window_bounds = array<i64: 8, 3, 128>}, {transform_indices = @transform_1, window_bounds = array<i64: 8, 3, 128>}, {transform_indices = @transform_2, window_bounds = array<i64: 8, 128>}]} {
    %c0_i32 = arith.constant 0 : i32
    %0 = arith.cmpi eq, %arg2, %c0_i32 : i32
    %1 = arith.extui %0 : i1 to i32
    %c0_i32_0 = arith.constant 0 : i32
    %2 = arith.cmpi ne, %1, %c0_i32_0 : i32
    scf.if %2 {
      %cst_9 = arith.constant 0.000000e+00 : f32
      %14 = vector.broadcast %cst_9 : f32 to vector<8x128xf32>
      %c0_10 = arith.constant 0 : index
      %c0_11 = arith.constant 0 : index
      %15 = vector.load %arg5[%c0_10, %c0_11] : memref<8x128xf32, #tpu.memory_space<vmem>>, vector<8x128xf32>
      tpu.vector_store %arg5[%c0_10, %c0_11], %14 {strides = array<i32>} : memref<8x128xf32, #tpu.memory_space<vmem>>, vector<8x128xf32>,
    } else {
    }
    %c0 = arith.constant 0 : index
    %c0_1 = arith.constant 0 : index
    %c0_2 = arith.constant 0 : index
    %3 = vector.load %arg3[%c0, %c0_1, %c0_2] : memref<8x3x128xf32, #tpu.memory_space<vmem>>, vector<8x3x128xf32>
    %c0_3 = arith.constant 0 : index
    %c0_4 = arith.constant 0 : index
    %c0_5 = arith.constant 0 : index
    %4 = vector.load %arg4[%c0_3, %c0_4, %c0_5] : memref<8x3x128xf32, #tpu.memory_space<vmem>>, vector<8x3x128xf32>
    %5 = arith.subf %3, %4 : vector<8x3x128xf32>
    %6 = arith.mulf %5, %5 : vector<8x3x128xf32>
    %cst = arith.constant dense<0.000000e+00> : vector<8x128xf32>
    %7 = vector.multi_reduction <add>, %6, %cst [1] : vector<8x3x128xf32> to vector<8x128xf32>
    %c0_i32_6 = arith.constant 0 : i32
    %8 = arith.cmpi eq, %arg0, %c0_i32_6 : i32
    %9 = arith.extui %8 : i1 to i32
    %c0_i32_7 = arith.constant 0 : i32
    %10 = arith.cmpi ne, %9, %c0_i32_7 : i32
    scf.if %10 {
      %14 = tpu.iota {dimensions = array<i32: 0>} : vector<8x128xi32>
      %c8_i32 = arith.constant 8 : i32
      %15 = arith.muli %arg0, %c8_i32 : i32
      %16 = vector.broadcast %15 : i32 to vector<8x128xi32>
      %17 = arith.addi %14, %16 : vector<8x128xi32>
      %18 = tpu.iota {dimensions = array<i32: 1>} : vector<8x128xi32>
      %c1_i32 = arith.constant 1 : i32
      %19 = arith.muli %arg1, %c1_i32 : i32
      %20 = arith.addi %19, %arg2 : i32
      %c128_i32 = arith.constant 128 : i32
      %21 = arith.muli %20, %c128_i32 : i32
      %22 = vector.broadcast %21 : i32 to vector<8x128xi32>
      %23 = arith.addi %18, %22 : vector<8x128xi32>
      %c2_i32 = arith.constant 2 : i32
      %24 = vector.broadcast %c2_i32 : i32 to vector<8x128xi32>
      %25 = arith.cmpi slt, %17, %24 : vector<8x128xi32>
      %c128_i32_9 = arith.constant 128 : i32
      %26 = vector.broadcast %c128_i32_9 : i32 to vector<8x128xi32>
      %27 = arith.cmpi slt, %23, %26 : vector<8x128xi32>
      %28 = arith.andi %25, %27 : vector<8x128xi1>
      %c0_10 = arith.constant 0 : index
      %c0_11 = arith.constant 0 : index
      %29 = vector.load %arg5[%c0_10, %c0_11] : memref<8x128xf32, #tpu.memory_space<vmem>>, vector<8x128xf32>
      %cst_12 = arith.constant 0.000000e+00 : f32
      %30 = vector.broadcast %cst_12 : f32 to vector<8x128xf32>
      %31 = arith.select %28, %7, %30 : vector<8x128xi1>, vector<8x128xf32>
      %32 = math.sqrt %31 : vector<8x128xf32>
      %33 = arith.addf %29, %32 : vector<8x128xf32>
      %c0_13 = arith.constant 0 : index
      %c0_14 = arith.constant 0 : index
      %34 = vector.load %arg5[%c0_13, %c0_14] : memref<8x128xf32, #tpu.memory_space<vmem>>, vector<8x128xf32>
      tpu.vector_store %arg5[%c0_13, %c0_14], %33 {strides = array<i32>} : memref<8x128xf32, #tpu.memory_space<vmem>>, vector<8x128xf32>,
    } else {
    }
    %true = arith.constant true
    %11 = arith.xori %8, %true : i1
    %12 = arith.extui %11 : i1 to i32
    %c0_i32_8 = arith.constant 0 : i32
    %13 = arith.cmpi ne, %12, %c0_i32_8 : i32
    scf.if %13 {
      %c0_9 = arith.constant 0 : index
      %c0_10 = arith.constant 0 : index
      %14 = vector.load %arg5[%c0_9, %c0_10] : memref<8x128xf32, #tpu.memory_space<vmem>>, vector<8x128xf32>
      %15 = math.sqrt %7 : vector<8x128xf32>
      %16 = arith.addf %14, %15 : vector<8x128xf32>
      %c0_11 = arith.constant 0 : index
      %c0_12 = arith.constant 0 : index
      %17 = vector.load %arg5[%c0_11, %c0_12] : memref<8x128xf32, #tpu.memory_space<vmem>>, vector<8x128xf32>
      tpu.vector_store %arg5[%c0_11, %c0_12], %16 {strides = array<i32>} : memref<8x128xf32, #tpu.memory_space<vmem>>, vector<8x128xf32>,
    } else {
    }
    return
  }
  func.func @transform_0(%arg0: i32, %arg1: i32, %arg2: i32) -> (i32, i32, i32) {
    %c1_i32 = arith.constant 1 : i32
    %0 = arith.muli %arg1, %c1_i32 : i32
    %1 = arith.addi %0, %arg2 : i32
    %c0_i32 = arith.constant 0 : i32
    %c0_i32_0 = arith.constant 0 : i32
    return %arg0, %c0_i32, %1 : i32, i32, i32
  }
  func.func @transform_1(%arg0: i32, %arg1: i32, %arg2: i32) -> (i32, i32, i32) {
    %c1_i32 = arith.constant 1 : i32
    %0 = arith.muli %arg1, %c1_i32 : i32
    %1 = arith.addi %0, %arg2 : i32
    %c0_i32 = arith.constant 0 : i32
    %c0_i32_0 = arith.constant 0 : i32
    return %arg0, %c0_i32, %1 : i32, i32, i32
  }
  func.func @transform_2(%arg0: i32, %arg1: i32, %arg2: i32) -> (i32, i32) {
    %c0_i32 = arith.constant 0 : i32
    return %arg0, %arg1 : i32, i32
  }
}

</mosaic_0001>

<llo_original>
// kernel: tpu_custom_call.1
$region0: #{tpu_custom_call.1}
  #allocation0 [shape = 'u32[]', space=smem, size = 0x4, offset = 0x4, fixed_abs, tag = 'smem constant byte address 0x4 - core index']
  #allocation1 [shape = 'u32[144,128]{1,0:T(1,128)}', space=vmem, size = 0x12000, scoped, tag = 'internal scratch']
  %s0 = inlined_call_operand.vmem [shape: f32[2,3,128], index: 0, kind: input, shape index: {}]
  %s1 = inlined_call_operand.vmem [shape: f32[2,3,128], index: 1, kind: input, shape index: {}]
  %s2 = inlined_call_operand.hbm [shape: f32[2,128], index: 2, kind: output, shape index: {}]
  %s3 = sld [smem:[#allocation0]]
  $region30: #{tpu_custom_call.1} parent=0
    _
  %s5 = ssub.s32 1, %s3
  %s6 = scalar_select 0, %s5, %s3
  $region1: #{tpu_custom_call.1} parent=0
    #allocation2 [shape = 'u8[4096]{0}', space=vmem, size = 0x1000, scoped, tag = 'output window, operand 0, single buffered']
    #allocation3 [shape = 's32[1]{0}', space=sflag, size = 0x4, scoped, tag = 'scoped memory for tpu_custom_call.1']
    %7 = vsyncpa [#allocation3], 0
    // Predicated region
    $region2: #{tpu_custom_call.1} parent=1 // pred_check
      _
    $region3: #{tpu_custom_call.1} parent=1 // pred_check_branch
      %9 = sbr.rel (0) target = $region5
    $region4: #{tpu_custom_call.1} parent=1 // pred_region
      %s10 = sadd.s32 0, 0
      %p11 = scmp.lt.s32.totalorder %s10, 0
      %s12 = scalar_select %p11, %s10, 0
      %s13 = smul.addr %s12, 4
      %s14 = scalar_lea.vmem %s0, %s13
      %s15 = sadd.s32 0, 0
    $region5: #{tpu_custom_call.1} parent=1 // pred_fallthru
      _
    // Predicated region
    $region6: #{tpu_custom_call.1} parent=1 // pred_check
      _
    $region7: #{tpu_custom_call.1} parent=1 // pred_check_branch
      %17 = sbr.rel (0) target = $region9
    $region8: #{tpu_custom_call.1} parent=1 // pred_region
      %s18 = sadd.s32 0, 0
      %p19 = scmp.lt.s32.totalorder %s18, 0
      %s20 = scalar_select %p19, %s18, 0
      %s21 = smul.addr %s20, 4
      %s22 = scalar_lea.vmem %s1, %s21
      %s23 = sadd.s32 0, 0
    $region9: #{tpu_custom_call.1} parent=1 // pred_fallthru
      _
    %s24 = sadd.s32 0, 0
    %p25 = scmp.lt.s32.totalorder %s24, 0
    %s26 = scalar_select %p25, %s24, 0
    %s27 = smul.addr %s26, 4
    %s28 = scalar_lea.vmem %s0, %s27
    %s29 = sadd.s32 0, 0
    %p30 = scmp.lt.s32.totalorder %s29, 0
    %s31 = scalar_select %p30, %s29, 0
    %s32 = smul.addr %s31, 4
    %s33 = scalar_lea.vmem %s1, %s32
    %s34 = sadd.s32 0, 0
    %p35 = scmp.lt.s32.totalorder %s34, 0
    %s36 = scalar_select %p35, %s34, 0
    %s37 = smul.addr %s36, 4
    %s38 = scalar_lea.vmem %s0, %s37
    %s39 = sadd.s32 0, 0
    %s40 = sadd.s32 0, 0
    %p41 = scmp.lt.s32.totalorder %s40, 0
    %s42 = scalar_select %p41, %s40, 0
    %s43 = smul.addr %s42, 4
    %s44 = scalar_lea.vmem %s1, %s43
    %s45 = sadd.s32 0, 0
    %p46 = scmp.eq.s32.totalorder 0, 0
    // Predicated region
    $region10: #{tpu_custom_call.1} parent=1 // pred_check
      %p47 = pneg %p46
    $region11: #{tpu_custom_call.1} parent=1 // pred_check_branch
      %49 = sbr.rel (%p47) target = $region13
    $region12: #{tpu_custom_call.1} parent=1 // pred_region
      %50 = vst [vmem:[#allocation2] sm:$0xff] 0.0
    $region13: #{tpu_custom_call.1} parent=1 // pred_fallthru
      _
    %v51 = vld [vmem:[%s38] sm:$0x7]
    %v52 = vld [vmem:[%s38 + $0x4] sm:$0x7]
    %v53 = vld [vmem:[%s38 + $0x8] sm:$0x7]
    %v54 = vld [vmem:[%s38 + $0xc] sm:$0x7]
    %v55 = vld [vmem:[%s38 + $0x10] sm:$0x7]
    %v56 = vld [vmem:[%s38 + $0x14] sm:$0x7]
    %v57 = vld [vmem:[%s38 + $0x18] sm:$0x7]
    %v58 = vld [vmem:[%s38 + $0x1c] sm:$0x7]
    %v59 = vld [vmem:[%s44] sm:$0x7]
    %v60 = vld [vmem:[%s44 + $0x4] sm:$0x7]
    %v61 = vld [vmem:[%s44 + $0x8] sm:$0x7]
    %v62 = vld [vmem:[%s44 + $0xc] sm:$0x7]
    %v63 = vld [vmem:[%s44 + $0x10] sm:$0x7]
    %v64 = vld [vmem:[%s44 + $0x14] sm:$0x7]
    %v65 = vld [vmem:[%s44 + $0x18] sm:$0x7]
    %v66 = vld [vmem:[%s44 + $0x1c] sm:$0x7]
    %v67 = vsub.f32 %v51, %v59
    %v68 = vsub.f32 %v52, %v60
    %v69 = vsub.f32 %v53, %v61
    %v70 = vsub.f32 %v54, %v62
    %v71 = vsub.f32 %v55, %v63
    %v72 = vsub.f32 %v56, %v64
    %v73 = vsub.f32 %v57, %v65
    %v74 = vsub.f32 %v58, %v66
    %v75 = vmul.f32 %v67, %v67
    %v76 = vmul.f32 %v68, %v68
    %v77 = vmul.f32 %v69, %v69
    %v78 = vmul.f32 %v70, %v70
    %v79 = vmul.f32 %v71, %v71
    %v80 = vmul.f32 %v72, %v72
    %v81 = vmul.f32 %v73, %v73
    %v82 = vmul.f32 %v74, %v74
    %vm83 = vcmask 1042432
    %v84 = vsel %vm83, %v75, 0.0
    %v85 = vrot.slane %v84, 4
    %v86 = vadd.f32 %v84, %v85
    %v87 = vrot.slane %v86, 2
    %v88 = vadd.f32 %v86, %v87
    %v89 = vrot.slane %v88, 1
    %v90 = vadd.f32 %v88, %v89
    %v91 = vsel %vm83, %v76, 0.0
    %v92 = vrot.slane %v91, 4
    %v93 = vadd.f32 %v91, %v92
    %v94 = vrot.slane %v93, 2
    %v95 = vadd.f32 %v93, %v94
    %v96 = vrot.slane %v95, 1
    %v97 = vadd.f32 %v95, %v96
    %v98 = vsel %vm83, %v77, 0.0
    %v99 = vrot.slane %v98, 4
    %v100 = vadd.f32 %v98, %v99
    %v101 = vrot.slane %v100, 2
    %v102 = vadd.f32 %v100, %v101
    %v103 = vrot.slane %v102, 1
    %v104 = vadd.f32 %v102, %v103
    %v105 = vsel %vm83, %v78, 0.0
    %v106 = vrot.slane %v105, 4
    %v107 = vadd.f32 %v105, %v106
    %v108 = vrot.slane %v107, 2
    %v109 = vadd.f32 %v107, %v108
    %v110 = vrot.slane %v109, 1
    %v111 = vadd.f32 %v109, %v110
    %v112 = vsel %vm83, %v79, 0.0
    %v113 = vrot.slane %v112, 4
    %v114 = vadd.f32 %v112, %v113
    %v115 = vrot.slane %v114, 2
    %v116 = vadd.f32 %v114, %v115
    %v117 = vrot.slane %v116, 1
    %v118 = vadd.f32 %v116, %v117
    %v119 = vsel %vm83, %v80, 0.0
    %v120 = vrot.slane %v119, 4
    %v121 = vadd.f32 %v119, %v120
    %v122 = vrot.slane %v121, 2
    %v123 = vadd.f32 %v121, %v122
    %v124 = vrot.slane %v123, 1
    %v125 = vadd.f32 %v123, %v124
    %v126 = vsel %vm83, %v81, 0.0
    %v127 = vrot.slane %v126, 4
    %v128 = vadd.f32 %v126, %v127
    %v129 = vrot.slane %v128, 2
    %v130 = vadd.f32 %v128, %v129
    %v131 = vrot.slane %v130, 1
    %v132 = vadd.f32 %v130, %v131
    %v133 = vsel %vm83, %v82, 0.0
    %v134 = vrot.slane %v133, 4
    %v135 = vadd.f32 %v133, %v134
    %v136 = vrot.slane %v135, 2
    %v137 = vadd.f32 %v135, %v136
    %v138 = vrot.slane %v137, 1
    %v139 = vadd.f32 %v137, %v138
    %p140 = scmp.eq.s32.totalorder 0, 0
    // Predicated region
    $region14: #{tpu_custom_call.1} parent=1 // pred_check
      %p141 = pneg %p140
    $region15: #{tpu_custom_call.1} parent=1 // pred_check_branch
      %143 = sbr.rel (%p141) target = $region17
    $region16: #{tpu_custom_call.1} parent=1 // pred_region
      %v144 = vlaneseq
      %v145 = vshrl.u32 %v144, 7
      %s146 = smul.u32 0, 8
      %v147 = vstv %s146
      %v148 = vadd.s32 %v145, %v147
      %v149 = vlaneseq
      %v150 = vand.u32 %v149, 127
      %s151 = sadd.s32 0, 0
      %s152 = smul.u32 %s151, 128
      %v153 = vstv %s152
      %v154 = vadd.s32 %v150, %v153
      %vm155 = vcmp.lt.s32.totalorder %v148, 2
      %vm156 = vcmp.lt.s32.totalorder %v154, 128
      %vm157 = vmand %vm155, %vm156
      %v158 = vld [vmem:[#allocation2] sm:$0xff]
      %vm167 = vcmask 1041409
      %v168 = vsel %vm167, %v97, %v90
      %vm169 = vcmask 1042434
      %v170 = vsel %vm169, %v104, %v168
      %vm171 = vcmask 1043459
      %v172 = vsel %vm171, %v111, %v170
      %vm173 = vcmask 1044484
      %v174 = vsel %vm173, %v118, %v172
      %vm175 = vcmask 1045509
      %v176 = vsel %vm175, %v125, %v174
      %vm177 = vcmask 1046534
      %v178 = vsel %vm177, %v132, %v176
      %vm179 = vcmask 1047559
      %v180 = vsel %vm179, %v139, %v178
      %v182 = vsel %vm157, %v180, 0.0
      %v183 = vrsqrt.pop %v182
      %v184 = vmul.f32 %v182, %v183
      %vm185 = vcmp.eq.f32.partialorder %v182, inf
      %v186 = vsel %vm185, %v182, %v184
      %vm187 = vcmp.eq.f32.partialorder %v182, 0.0
      %v188 = vand.u32 %v182, 2147483648
      %v189 = vsel %vm187, %v188, %v186
      %v190 = vadd.f32 %v158, %v189
      %191 = vst [vmem:[#allocation2] sm:$0xff] %v190
    $region17: #{tpu_custom_call.1} parent=1 // pred_fallthru
      _
    %p192 = scmp.ne.s32.totalorder 0, 0
    // Predicated region
    $region18: #{tpu_custom_call.1} parent=1 // pred_check
      %p193 = pneg %p192
    $region19: #{tpu_custom_call.1} parent=1 // pred_check_branch
      %195 = sbr.rel (%p193) target = $region21
    $region20: #{tpu_custom_call.1} parent=1 // pred_region
      %v196 = vld [vmem:[#allocation2] sm:$0xff]
      %v197 = vrsqrt.pop %v90
      %v198 = vmul.f32 %v90, %v197
      %vm199 = vcmp.eq.f32.partialorder %v90, inf
      %v200 = vsel %vm199, %v90, %v198
      %vm201 = vcmp.eq.f32.partialorder %v90, 0.0
      %v202 = vand.u32 %v90, 2147483648
      %v203 = vsel %vm201, %v202, %v200
      %v204 = vrsqrt.pop %v97
      %v205 = vmul.f32 %v97, %v204
      %vm206 = vcmp.eq.f32.partialorder %v97, inf
      %v207 = vsel %vm206, %v97, %v205
      %vm208 = vcmp.eq.f32.partialorder %v97, 0.0
      %v209 = vand.u32 %v97, 2147483648
      %v210 = vsel %vm208, %v209, %v207
      %v211 = vrsqrt.pop %v104
      %v212 = vmul.f32 %v104, %v211
      %vm213 = vcmp.eq.f32.partialorder %v104, inf
      %v214 = vsel %vm213, %v104, %v212
      %vm215 = vcmp.eq.f32.partialorder %v104, 0.0
      %v216 = vand.u32 %v104, 2147483648
      %v217 = vsel %vm215, %v216, %v214
      %v218 = vrsqrt.pop %v111
      %v219 = vmul.f32 %v111, %v218
      %vm220 = vcmp.eq.f32.partialorder %v111, inf
      %v221 = vsel %vm220, %v111, %v219
      %vm222 = vcmp.eq.f32.partialorder %v111, 0.0
      %v223 = vand.u32 %v111, 2147483648
      %v224 = vsel %vm222, %v223, %v221
      %v225 = vrsqrt.pop %v118
      %v226 = vmul.f32 %v118, %v225
      %vm227 = vcmp.eq.f32.partialorder %v118, inf
      %v228 = vsel %vm227, %v118, %v226
      %vm229 = vcmp.eq.f32.partialorder %v118, 0.0
      %v230 = vand.u32 %v118, 2147483648
      %v231 = vsel %vm229, %v230, %v228
      %v232 = vrsqrt.pop %v125
      %v233 = vmul.f32 %v125, %v232
      %vm234 = vcmp.eq.f32.partialorder %v125, inf
      %v235 = vsel %vm234, %v125, %v233
      %vm236 = vcmp.eq.f32.partialorder %v125, 0.0
      %v237 = vand.u32 %v125, 2147483648
      %v238 = vsel %vm236, %v237, %v235
      %v239 = vrsqrt.pop %v132
      %v240 = vmul.f32 %v132, %v239
      %vm241 = vcmp.eq.f32.partialorder %v132, inf
      %v242 = vsel %vm241, %v132, %v240
      %vm243 = vcmp.eq.f32.partialorder %v132, 0.0
      %v244 = vand.u32 %v132, 2147483648
      %v245 = vsel %vm243, %v244, %v242
      %v246 = vrsqrt.pop %v139
      %v247 = vmul.f32 %v139, %v246
      %vm248 = vcmp.eq.f32.partialorder %v139, inf
      %v249 = vsel %vm248, %v139, %v247
      %vm250 = vcmp.eq.f32.partialorder %v139, 0.0
      %v251 = vand.u32 %v139, 2147483648
      %v252 = vsel %vm250, %v251, %v249
      %vm261 = vcmask 1041409
      %v262 = vsel %vm261, %v210, %v203
      %vm263 = vcmask 1042434
      %v264 = vsel %vm263, %v217, %v262
      %vm265 = vcmask 1043459
      %v266 = vsel %vm265, %v224, %v264
      %vm267 = vcmask 1044484
      %v268 = vsel %vm267, %v231, %v266
      %vm269 = vcmask 1045509
      %v270 = vsel %vm269, %v238, %v268
      %vm271 = vcmask 1046534
      %v272 = vsel %vm271, %v245, %v270
      %vm273 = vcmask 1047559
      %v274 = vsel %vm273, %v252, %v272
      %v276 = vadd.f32 %v196, %v274
      %277 = vst [vmem:[#allocation2] sm:$0xff] %v276
    $region21: #{tpu_custom_call.1} parent=1 // pred_fallthru
      _
    // Predicated region
    $region22: #{tpu_custom_call.1} parent=1 // pred_check
      _
    $region23: #{tpu_custom_call.1} parent=1 // pred_check_branch
      %279 = sbr.rel (0) target = $region25
    $region24: #{tpu_custom_call.1} parent=1 // pred_region
      %s281 = ssub.s32 128, 32
      %282 = vsyncadd [#allocation3], %s281
      %s283 = sshll.u32 [#allocation2], 4
      %s284 = int_to_ptr.vmem [resolvable:$true] %s283
      %289 = dma.vmem_to_hbm [thread:$0]  %s284, 32, %s2, [#allocation3], 32, 32, 2
    $region25: #{tpu_custom_call.1} parent=1 // pred_fallthru
      _
    // Predicated region
    $region26: #{tpu_custom_call.1} parent=1 // pred_check
      _
    $region27: #{tpu_custom_call.1} parent=1 // pred_check_branch
      %291 = sbr.rel (0) target = $region29
    $region28: #{tpu_custom_call.1} parent=1 // pred_region
      %292 = dma.done [#allocation3], 128
    $region29: #{tpu_custom_call.1} parent=1 // pred_fallthru
      _
    %293 = vsyncpa [#allocation3], 1

</llo_original>
